<compile_context>
chip_gen: v7x
topology: tpu7x:2x2x1
jax: 0.10.0
libtpu: 0.0.40
codegen_flags: <defaults>
</compile_context>

<pallas_src>
import jax
import jax.numpy as jnp
from jax.experimental import pallas as pl
from jax.experimental.pallas import tpu as pltpu


# ----------------------------------------------------------------------------
# Kernels
# ----------------------------------------------------------------------------
def _identity_copy_kernel(x_ref, o_ref):
    # Pure pass-through of the VMEM tile.
    o_ref[...] = x_ref[...]


# ----------------------------------------------------------------------------
# Per-generation sizing helpers
# ----------------------------------------------------------------------------
def _vmem_capacity_bytes() -> int:
    """Physical VMEM per TensorCore, queried at trace time (fallback: 64 MiB)."""
    try:
        info = pltpu.get_tpu_info()
        cap = getattr(info, "vmem_capacity_bytes", None)
        if cap:
            return int(cap)
    except Exception:
        pass
    return 64 * 1024 * 1024  # conservative: v7x per-TC VMEM


def _tile_bytes_budget() -> int:
    """Per-tile VMEM budget (~1/8 of physical, capped at 8 MiB).

    4 live buffers (double-buffered in + out) then use <= ~32 MiB: ample on
    v5e/v6e (128 MiB physical) and still leaves headroom on v7x (64 MiB).
    """
    cap = _vmem_capacity_bytes()
    return max(1 << 20, min(8 << 20, cap // 8))


# ----------------------------------------------------------------------------
# Pallas identity copy
# ----------------------------------------------------------------------------
def _whole_array_copy(x: jax.Array, vmem_limit: int) -> jax.Array:
    # Fallback for sizes not divisible by 128 lanes: single full-array block
    # (block == full array dims, so no (8,128) constraint applies).
    # TODO(synk): very large irregular arrays (> ~VMEM) would need in-kernel
    #             tail masking instead of a whole-array block.
    return pl.pallas_call(
        _identity_copy_kernel,
        out_shape=jax.ShapeDtypeStruct(x.shape, x.dtype),
        compiler_params=pltpu.CompilerParams(vmem_limit_bytes=vmem_limit),
    )(x)


def _identity_copy_pallas(x: jax.Array) -> jax.Array:
    """Optimized on-TPU identity copy (lane-dense tiles, no wrapper pad/slice)."""
    dtype = x.dtype
    itemsize = jnp.dtype(dtype).itemsize
    n = x.size
    if n == 0:
        return x

    cap = _vmem_capacity_bytes()

    # Fast path requires a lane-dense column width (multiple of 128) that
    # divides n exactly -> the 2-D reshape below is a zero-copy view and no
    # wrapper pad or output slice is needed.
    cols = next((c for c in (1024, 512, 256, 128) if n % c == 0), None)
    if cols is None:
        vmem_limit = min(int(cap * 0.7), max(32 << 20, 2 * n * itemsize + (8 << 20)))
        y = _whole_array_copy(x, vmem_limit)
        return y

    rows = n // cols
    x2d = x.reshape(rows, cols)  # contiguous reshape: free, no HBM traffic

    # Sublane pack factor: 8 for f32, 16 for bf16, 32 for int8/fp8.
    sublane = max(8, 32 // itemsize)

    # Tile rows from the per-generation byte budget, rounded to sublanes.
    tile_budget = _tile_bytes_budget()
    max_tile_rows = max(
        sublane, (tile_budget // (cols * itemsize)) // sublane * sublane
    )

    if rows >= 2 * sublane:
        # Keep at least 2 grid steps so both v7x TensorCores get work under
        # dimension_semantics=("parallel",).
        half_rows = -(-rows // 2)
        half_rows = -(-half_rows // sublane) * sublane  # round up to sublane
        tile_rows = min(max_tile_rows, half_rows)
    else:
        # Small arrays: one block covering all rows (block == full dim is OK).
        tile_rows = min(max_tile_rows, rows)

    grid = (-(-rows // tile_rows),)  # cdiv; ragged tail masked by Pallas

    # Explicit scoped-VMEM limit: 2x double-buffered (in + out) tiles plus
    # headroom, capped well under physical VMEM on every generation.
    tile_bytes = tile_rows * cols * itemsize
    vmem_limit = min(int(cap * 0.7), max(32 << 20, 4 * tile_bytes + (8 << 20)))

    out2d = pl.pallas_call(
        _identity_copy_kernel,
        out_shape=jax.ShapeDtypeStruct((rows, cols), dtype),
        grid_spec=pltpu.PrefetchScalarGridSpec(
            num_scalar_prefetch=0,
            grid=grid,
            in_specs=[pl.BlockSpec((tile_rows, cols), lambda i: (i, 0))],
            out_specs=pl.BlockSpec((tile_rows, cols), lambda i: (i, 0)),
        ),
        compiler_params=pltpu.CompilerParams(
            dimension_semantics=("parallel",),  # shard grid across TCs (v7x)
            vmem_limit_bytes=vmem_limit,
        ),
    )(x2d)

    return out2d.reshape(x.shape)


# ----------------------------------------------------------------------------
# Public forward
# ----------------------------------------------------------------------------
def base_model_forward(x: jax.Array, use_kernel: bool = False) -> jax.Array:
    """Pallas equivalent of BaseModel.forward (an abstract no-op).

    Default (fastest, faithful) path: return the input untouched -- zero cost,
    no kernel launch.  Set use_kernel=True to route through the optimized
    Pallas identity-copy kernel instead (a fresh HBM buffer is returned; the
    unavoidable cost of a materialized copy is the 2n-byte HBM read+write).
    """
    if not use_kernel:
        return x
    return _identity_copy_pallas(x)


if __name__ == "__main__":
    key = jax.random.PRNGKey(0)
    k0, k1, k2 = jax.random.split(key, 3)

    # Small NCHW input consistent with a conv-style model interface.
    x = jax.random.normal(k0, (2, 4, 16, 16), dtype=jnp.float32)

    # Faithful no-op path (no kernel launch).
    y_fast = base_model_forward(x)
    jax.block_until_ready(y_fast)
    assert y_fast.shape == x.shape and y_fast.dtype == x.dtype
    assert bool(jnp.all(y_fast == x))

    # Pallas kernel path: lane-dense copy (single tile, zero-copy reshape).
    y_kernel = base_model_forward(x, use_kernel=True)
    jax.block_until_ready(y_kernel)
    assert y_kernel.shape == x.shape and y_kernel.dtype == x.dtype
    assert bool(jnp.all(y_kernel == x))

    # Multi-tile grid (2 parallel tiles -> exercises megacore sharding path).
    x_big = jax.random.normal(k1, (64, 1024), dtype=jnp.float32)
    y_big = base_model_forward(x_big, use_kernel=True)
    jax.block_until_ready(y_big)
    assert y_big.shape == x_big.shape and y_big.dtype == x_big.dtype
    assert bool(jnp.all(y_big == x_big))

    # Irregular size (not a multiple of 128) -> whole-array-block fallback,
    # still no wrapper pad/slice.
    x_odd = jax.random.normal(k2, (3, 7, 11), dtype=jnp.float32)
    y_odd = base_model_forward(x_odd, use_kernel=True)
    jax.block_until_ready(y_odd)
    assert y_odd.shape == x_odd.shape and y_odd.dtype == x_odd.dtype
    assert bool(jnp.all(y_odd == x_odd))

    print("KERNEL_OK")
</pallas_src>

<mosaic_0001>
module attributes {stable_mosaic.version = 11 : i64} {
  func.func @_identity_copy_kernel(%arg0: i32, %arg1: memref<2x1024xf32, #tpu.memory_space<vmem>>, %arg2: memref<2x1024xf32, #tpu.memory_space<vmem>>) attributes {dimension_semantics = [#tpu.dimension_semantics<parallel>], iteration_bounds = array<i64: 1>, scalar_prefetch = 0 : i64, scratch_operands = 0 : i64, tpu.core_type = #tpu.core_type<tc>, window_params = [{transform_indices = @transform_0, window_bounds = array<i64: 2, 1024>}, {transform_indices = @transform_1, window_bounds = array<i64: 2, 1024>}]} {
    %c0 = arith.constant 0 : index
    %c0_0 = arith.constant 0 : index
    %0 = vector.load %arg1[%c0, %c0_0] : memref<2x1024xf32, #tpu.memory_space<vmem>>, vector<2x1024xf32>
    %c0_1 = arith.constant 0 : index
    %c0_2 = arith.constant 0 : index
    %1 = vector.load %arg2[%c0_1, %c0_2] : memref<2x1024xf32, #tpu.memory_space<vmem>>, vector<2x1024xf32>
    tpu.vector_store %arg2[%c0_1, %c0_2], %0 {strides = array<i32>} : memref<2x1024xf32, #tpu.memory_space<vmem>>, vector<2x1024xf32>,
    return
  }
  func.func @transform_0(%arg0: i32) -> (i32, i32) {
    %c0_i32 = arith.constant 0 : i32
    %c0_i32_0 = arith.constant 0 : i32
    return %arg0, %c0_i32 : i32, i32
  }
  func.func @transform_1(%arg0: i32) -> (i32, i32) {
    %c0_i32 = arith.constant 0 : i32
    %c0_i32_0 = arith.constant 0 : i32
    return %arg0, %c0_i32 : i32, i32
  }
}

</mosaic_0001>

<llo_original>
// kernel: tpu_custom_call.1
$region0: #{tpu_custom_call.1}
  #allocation0 [shape = 'u32[]', space=smem, size = 0x4, offset = 0x4, fixed_abs, tag = 'smem constant byte address 0x4 - core index']
  #allocation1 [shape = 'u32[144,128]{1,0:T(1,128)}', space=vmem, size = 0x12000, scoped, tag = 'internal scratch']
  %s0 = inlined_call_operand.hbm [shape: f32[2,1024], index: 0, kind: input, shape index: {}]
  %s1 = inlined_call_operand.hbm [shape: f32[2,1024], index: 1, kind: output, shape index: {}]
  %s2 = sld [smem:[#allocation0]]
  $region18: #{tpu_custom_call.1} parent=0
    _
  %s4 = ssub.s32 1, %s2
  %s5 = scalar_select 0, %s4, %s2
  $region1: #{tpu_custom_call.1} parent=0
    #allocation2 [shape = 'u8[8192]{0}', space=vmem, size = 0x2000, scoped, tag = 'input window, operand 0, single buffered']
    #allocation3 [shape = 's32[1]{0}', space=sflag, size = 0x4, scoped, tag = 'scoped memory for tpu_custom_call.1']
    #allocation4 [shape = 's32[1]{0}', space=sflag, size = 0x4, scoped, tag = 'scoped memory for tpu_custom_call.1']
    #allocation5 [shape = 'u8[8192]{0}', space=vmem, size = 0x2000, scoped, tag = 'output window, operand 0, single buffered']
    %6 = vsyncpa [#allocation3], 0
    %7 = vsyncpa [#allocation4], 0
    // Predicated region
    $region2: #{tpu_custom_call.1} parent=1 // pred_check
      _
    $region3: #{tpu_custom_call.1} parent=1 // pred_check_branch
      %9 = sbr.rel (0) target = $region5
    $region4: #{tpu_custom_call.1} parent=1 // pred_region
      %s11 = ssub.s32 256, 256
      %12 = vsyncadd [#allocation3], %s11
      %s14 = sshll.u32 [#allocation2], 4
      %s15 = int_to_ptr.vmem [resolvable:$true] %s14
      %17 = dma.hbm_to_vmem [thread:$0]  %s0, 256, %s15, [#allocation3]
    $region5: #{tpu_custom_call.1} parent=1 // pred_fallthru
      _
    // Predicated region
    $region6: #{tpu_custom_call.1} parent=1 // pred_check
      _
    $region7: #{tpu_custom_call.1} parent=1 // pred_check_branch
      %19 = sbr.rel (0) target = $region9
    $region8: #{tpu_custom_call.1} parent=1 // pred_region
      %20 = dma.done [#allocation3], 256
    $region9: #{tpu_custom_call.1} parent=1 // pred_fallthru
      _
    %v21 = vld [vmem:[#allocation2] sm:$0xff]
    %v22 = vld [vmem:[#allocation2 + $0x8] sm:$0xff]
    %23 = vst [vmem:[#allocation5] sm:$0xff] %v21
    %24 = vst [vmem:[#allocation5 + $0x8] sm:$0xff] %v22
    // Predicated region
    $region10: #{tpu_custom_call.1} parent=1 // pred_check
      _
    $region11: #{tpu_custom_call.1} parent=1 // pred_check_branch
      %26 = sbr.rel (0) target = $region13
    $region12: #{tpu_custom_call.1} parent=1 // pred_region
      %s28 = ssub.s32 256, 256
      %29 = vsyncadd [#allocation4], %s28
      %s31 = sshll.u32 [#allocation5], 4
      %s32 = int_to_ptr.vmem [resolvable:$true] %s31
      %34 = dma.vmem_to_hbm [thread:$0]  %s32, 256, %s1, [#allocation4]
    $region13: #{tpu_custom_call.1} parent=1 // pred_fallthru
      _
    // Predicated region
    $region14: #{tpu_custom_call.1} parent=1 // pred_check
      _
    $region15: #{tpu_custom_call.1} parent=1 // pred_check_branch
      %36 = sbr.rel (0) target = $region17
    $region16: #{tpu_custom_call.1} parent=1 // pred_region
      %37 = dma.done [#allocation4], 256
    $region17: #{tpu_custom_call.1} parent=1 // pred_fallthru
      _
    %38 = vsyncpa [#allocation3], 1
    %39 = vsyncpa [#allocation4], 1

</llo_original>
